<compile_context>
chip_gen: v6e
topology: v6e:2x2x1
jax: 0.10.0
libtpu: 0.0.40
codegen_flags: <defaults>
</compile_context>

<pallas_src>
import functools
import math

import jax
import jax.numpy as jnp
from jax.experimental import pallas as pl
from jax.experimental.pallas import tpu as pltpu


def _translation_kernel(x_ref, t_ref, o_ref):
    # x_ref: (tile_rows, dim_f)  VMEM, embedding dtype
    # t_ref: (1, dim_f)          VMEM, output (promoted) dtype -> broadcast over rows
    # o_ref: (tile_rows, dim_f)  VMEM, output dtype
    o_ref[...] = (x_ref[...] + t_ref[...]).astype(o_ref.dtype)


def _device_kind() -> str:
    try:
        return jax.devices()[0].device_kind.lower()
    except Exception:  # pragma: no cover - defensive; detection is best-effort
        return ""


@functools.partial(jax.jit, static_argnames=("tile_bytes", "force_pallas"))
def translation_operator(embeddings, translation, *, tile_bytes=4 * 1024 * 1024,
                         force_pallas=False):
    """Pallas implementation of TranslationOperator.forward.

    embeddings:  (..., dim)
    translation: (dim,)
    returns:     (..., dim) == embeddings + translation (PyTorch promotion rules)
    """
    dim = embeddings.shape[-1]
    assert translation.shape == (dim,), "translation must have shape (dim,)"

    lead_shape = embeddings.shape[:-1]
    n_rows = math.prod(lead_shape) if lead_shape else 1

    out_dtype = jnp.result_type(embeddings.dtype, translation.dtype)
    itemsize_in = jnp.dtype(embeddings.dtype).itemsize
    itemsize_out = jnp.dtype(out_dtype).itemsize

    # ---------------- Fast path: tiny inputs -> plain XLA fused add ------------
    in_bytes = n_rows * dim * itemsize_in
    if n_rows == 0 or dim == 0 or (not force_pallas and in_bytes < (1 << 20)):
        return (embeddings + translation).astype(out_dtype)

    x2d = embeddings.reshape(n_rows, dim)
    t1d = translation.astype(out_dtype)

    # ---------------- Lane densification (free reshape only) -------------------
    # Fold r rows together so the minor dim becomes a multiple of 128 (full-width
    # vst instead of masked partial stores). Only done when it is a pure reshape
    # (n_rows % r == 0); otherwise we'd pay an extra HBM pass for slicing/padding.
    fold = 1
    if dim % 128 != 0:
        r = 128 // math.gcd(dim, 128)
        if r > 1 and n_rows % r == 0:
            fold = r
    if fold > 1:
        x2d = x2d.reshape(n_rows // fold, fold * dim)
        t2d = jnp.tile(t1d, fold).reshape(1, fold * dim)
    else:
        t2d = t1d.reshape(1, dim)

    n_f, dim_f = x2d.shape

    # ---------------- Row-tile sizing ------------------------------------------
    # Sublane pack for the narrowest dtype touching VMEM (f32->8, bf16->16, i8->32).
    pack = max(8, 32 // min(itemsize_in, itemsize_out))

    # ~tile_bytes per input block; double-buffered in+out (+resident translation)
    # stays around 4x block bytes, comfortably inside the 32 MiB limit below.
    budget_rows = max(pack, tile_bytes // max(1, dim_f * itemsize_in))
    tile_rows = max(pack, (budget_rows // pack) * pack)

    kind = _device_kind()
    multi_core = ("v7" in kind) or ("tpu7" in kind)  # 2 TensorCores per chip
    if multi_core:
        # Keep enough grid steps so both TensorCores (each with its own HBM path)
        # get work; gains above ~4 MiB blocks are marginal anyway.
        target_steps = 8
        while tile_rows > pack and pl.cdiv(n_f, tile_rows) < target_steps:
            tile_rows = max(pack, ((tile_rows // 2) // pack) * pack)

    if tile_rows >= n_f:
        # Single block: make it exactly the array extent (always layout-legal).
        tile_rows = n_f

    grid_steps = pl.cdiv(n_f, tile_rows)
    grid = (grid_steps,)

    if multi_core and grid_steps >= 2:
        dim_sems = (pltpu.CORE_PARALLEL,)   # actually shards the row axis across TCs
    else:
        dim_sems = ("parallel",)

    cost = pl.CostEstimate(
        flops=n_rows * dim,
        transcendentals=0,
        bytes_accessed=n_rows * dim * (itemsize_in + itemsize_out) + dim * itemsize_out,
    )

    out2d = pl.pallas_call(
        _translation_kernel,
        out_shape=jax.ShapeDtypeStruct((n_f, dim_f), out_dtype),
        grid_spec=pltpu.PrefetchScalarGridSpec(
            num_scalar_prefetch=0,
            grid=grid,
            in_specs=[
                pl.BlockSpec((tile_rows, dim_f), lambda i: (i, 0)),  # embedding row tile
                pl.BlockSpec((1, dim_f), lambda i: (0, 0)),          # translation (resident)
            ],
            out_specs=pl.BlockSpec((tile_rows, dim_f), lambda i: (i, 0)),
        ),
        compiler_params=pltpu.CompilerParams(
            dimension_semantics=dim_sems,
            vmem_limit_bytes=32 * 1024 * 1024,
        ),
        cost_estimate=cost,
    )(x2d, t2d)

    return out2d.reshape(*lead_shape, dim)


if __name__ == "__main__":
    key = jax.random.PRNGKey(0)
    k_x, k_t, k_xb = jax.random.split(key, 3)

    # --- f32 test (small shape, forces the Pallas path; exercises row folding) ---
    batch, seq, dim = 2, 8, 32
    embeddings = jax.random.normal(k_x, (batch, seq, dim), dtype=jnp.float32)
    # Module initializes translation=0; use a nonzero value so the add is exercised.
    translation = 0.1 * jax.random.normal(k_t, (dim,), dtype=jnp.float32)

    out = translation_operator(embeddings, translation, force_pallas=True)
    out = jax.block_until_ready(out)
    ref = embeddings + translation
    assert out.shape == embeddings.shape and out.dtype == ref.dtype
    assert jnp.allclose(out, ref, atol=1e-6, rtol=1e-6), "f32 mismatch vs reference"

    # Default path (tiny input -> XLA fast path) must agree too.
    out_fast = jax.block_until_ready(translation_operator(embeddings, translation))
    assert jnp.allclose(out_fast, ref, atol=1e-6, rtol=1e-6), "fast-path mismatch"

    # --- bf16 embeddings + f32 translation: PyTorch-style promotion to f32 ------
    emb_bf16 = jax.random.normal(k_xb, (4, 8, dim), dtype=jnp.bfloat16)
    out_bf16 = translation_operator(emb_bf16, translation, force_pallas=True)
    out_bf16 = jax.block_until_ready(out_bf16)
    ref_bf16 = emb_bf16 + translation  # jnp promotes bf16 + f32 -> f32, same as torch
    assert out_bf16.dtype == ref_bf16.dtype == jnp.float32
    assert jnp.allclose(out_bf16, ref_bf16, atol=1e-6, rtol=1e-6), "bf16 mismatch"

    print("KERNEL_OK")
</pallas_src>

<mosaic_0001>
module attributes {stable_mosaic.version = 11 : i64} {
  func.func @_translation_kernel(%arg0: i32, %arg1: memref<4x128xf32, #tpu.memory_space<vmem>>, %arg2: memref<1x128xf32, #tpu.memory_space<vmem>>, %arg3: memref<4x128xf32, #tpu.memory_space<vmem>>) attributes {dimension_semantics = [#tpu.dimension_semantics<parallel>], iteration_bounds = array<i64: 1>, scalar_prefetch = 0 : i64, scratch_operands = 0 : i64, tpu.core_type = #tpu.core_type<tc>, window_params = [{transform_indices = @transform_0, window_bounds = array<i64: 4, 128>}, {pipeline_mode = #tpu.pipeline_mode<synchronous>, transform_indices = @transform_1, window_bounds = array<i64: 1, 128>}, {transform_indices = @transform_2, window_bounds = array<i64: 4, 128>}]} {
    %c0 = arith.constant 0 : index
    %c0_0 = arith.constant 0 : index
    %0 = vector.load %arg1[%c0, %c0_0] : memref<4x128xf32, #tpu.memory_space<vmem>>, vector<4x128xf32>
    %c0_1 = arith.constant 0 : index
    %c0_2 = arith.constant 0 : index
    %1 = vector.load %arg2[%c0_1, %c0_2] : memref<1x128xf32, #tpu.memory_space<vmem>>, vector<1x128xf32>
    %2 = vector.broadcast %1 : vector<1x128xf32> to vector<4x128xf32>
    %3 = arith.addf %0, %2 : vector<4x128xf32>
    %c0_3 = arith.constant 0 : index
    %c0_4 = arith.constant 0 : index
    %4 = vector.load %arg3[%c0_3, %c0_4] : memref<4x128xf32, #tpu.memory_space<vmem>>, vector<4x128xf32>
    tpu.vector_store %arg3[%c0_3, %c0_4], %3 {strides = array<i32>} : memref<4x128xf32, #tpu.memory_space<vmem>>, vector<4x128xf32>,
    return
  }
  func.func @transform_0(%arg0: i32) -> (i32, i32) {
    %c0_i32 = arith.constant 0 : i32
    %c0_i32_0 = arith.constant 0 : i32
    return %arg0, %c0_i32 : i32, i32
  }
  func.func @transform_1(%arg0: i32) -> (i32, i32) {
    %c0_i32 = arith.constant 0 : i32
    %c0_i32_0 = arith.constant 0 : i32
    %c0_i32_1 = arith.constant 0 : i32
    return %c0_i32, %c0_i32_0 : i32, i32
  }
  func.func @transform_2(%arg0: i32) -> (i32, i32) {
    %c0_i32 = arith.constant 0 : i32
    %c0_i32_0 = arith.constant 0 : i32
    return %arg0, %c0_i32 : i32, i32
  }
}

</mosaic_0001>

<llo_original>
// kernel: tile.9
$region0: #{tile.9}
  %s0 = inlined_call_operand.vmem [shape: f32[4,32], index: 0, kind: input, shape index: {}]
  %s1 = inlined_call_operand.vmem [shape: f32[1,128], index: 1, kind: output, shape index: {}]
  $region1: #{tile.9} parent=0
    #allocation0 [shape = 'u8[4096]{0}', space=vmem, size = 0x1000, scoped, tag = 'scoped mem for output reshape']
    #allocation1 [shape = 'u8[4096]{0}', space=vmem, size = 0x1000, scoped, tag = 'scoped mem for input reshape']
    %s3 = sshll.u32 1, 4
    %s4 = ssub.s32 %s3, 1
    %v5 = vld [vmem:[%s0] sm:%s4]
    %6 = vst [vmem:[#allocation1] sm:%s4] %v5
    %v7 = vld [vmem:[#allocation1] sm:$0x1]
    %vm8 = vcmask 261120
    %9 = vst.msk [vmem:[#allocation0] sm:$0x1] %vm8, %v7
    %s10 = scalar_lea.vmem [#allocation1], 3
    %v11 = vld [vmem:[%s10] sm:$0x1]
    %12 = vrot.lane.b32.xlu0 %v11, 96
    %v13 = vpop.permute.xlu0 %12
    %vm14 = vcmask 1048320
    %15 = vst.msk [vmem:[#allocation0] sm:$0x1] %vm14, %v13
    %s16 = scalar_lea.vmem [#allocation1], 2
    %v17 = vld [vmem:[%s16] sm:$0x1]
    %18 = vrot.lane.b32.xlu0 %v17, 64
    %v19 = vpop.permute.xlu0 %18
    %vm20 = vcmask 785920
    %21 = vst.msk [vmem:[#allocation0] sm:$0x1] %vm20, %v19
    %s22 = scalar_lea.vmem [#allocation1], 1
    %v23 = vld [vmem:[%s22] sm:$0x1]
    %24 = vrot.lane.b32.xlu0 %v23, 32
    %v25 = vpop.permute.xlu0 %24
    %vm26 = vcmask 523520
    %27 = vst.msk [vmem:[#allocation0] sm:$0x1] %vm26, %v25
    %s29 = sshll.u32 1, 1
    %s30 = ssub.s32 %s29, 1
    %v32 = vld [vmem:[#allocation0] sm:%s30]
    %s33 = sshll.u32 1, 1
    %s34 = ssub.s32 %s33, 1
    %35 = vst [vmem:[%s1] sm:%s34] %v32

// kernel: tile.8
$region0: #{tile.8}
  #allocation0 [shape = 's32[1]{0}', space=sflag, size = 0x4, scoped, tag = 'scoped memory for tile.8']
  %s0 = inlined_call_operand.vmem [shape: f32[32], index: 0, kind: input, shape index: {}]
  %s1 = inlined_call_operand.vmem [shape: f32[4,32], index: 1, kind: output, shape index: {}]
  // Predicated region
  $region2: #{tile.8} parent=0 // pred_check
    _
  $region3: #{tile.8} parent=0 // pred_check_branch
    %3 = sbr.rel (0) target = $region5
  $region4: #{tile.8} parent=0 // pred_region
    _
  $region5: #{tile.8} parent=0 // pred_fallthru
    _
  %v4 = vld [vmem:[%s0] ss:$0 sm:$0xff]
  %5 = vst [vmem:[%s1] sm:$0xf] %v4

// kernel: translation_operator.1
$region0: #{translation_operator.1}
  #allocation0 [shape = 'u32[]', space=smem, size = 0x4, offset = 0x4, fixed_abs, tag = 'smem constant byte address 0x4 - core index']
  #allocation1 [shape = 'u32[144,128]{1,0:T(1,128)}', space=vmem, size = 0x12000, scoped, tag = 'internal scratch']
  %s0 = inlined_call_operand.vmem [shape: f32[4,128], index: 0, kind: input, shape index: {}]
  %s1 = inlined_call_operand.vmem [shape: f32[1,128], index: 1, kind: input, shape index: {}]
  %s2 = inlined_call_operand.vmem [shape: f32[4,128], index: 2, kind: output, shape index: {}]
  %s3 = sld [smem:[#allocation0]]
  $region18: #{translation_operator.1} parent=0
    _
  %s5 = ssub.s32 1, %s3
  %s6 = scalar_select 0, %s5, %s3
  // Predicated region
  $region2: #{translation_operator.1} parent=0 // pred_check
    _
  $region3: #{translation_operator.1} parent=0 // pred_check_branch
    %8 = sbr.rel (0) target = $region5
  $region4: #{translation_operator.1} parent=0 // pred_region
    _
  $region5: #{translation_operator.1} parent=0 // pred_fallthru
    _
  // Predicated region
  $region6: #{translation_operator.1} parent=0 // pred_check
    _
  $region7: #{translation_operator.1} parent=0 // pred_check_branch
    %10 = sbr.rel (0) target = $region9
  $region8: #{translation_operator.1} parent=0 // pred_region
    _
  $region9: #{translation_operator.1} parent=0 // pred_fallthru
    _
  %v11 = vld [vmem:[%s0] sm:$0xf]
  %v12 = vld [vmem:[%s1] sm:$0x1]
  %v14 = vlaneseq
  %v15 = vshrl.u32 %v14, 7
  %v16 = vsub.s32 0, %v15
  %v17 = vrot.slane %v12, %v16
  %v19 = vadd.f32 %v11, %v17
  %20 = vst [vmem:[%s2] sm:$0xf] %v19
  // Predicated region
  $region10: #{translation_operator.1} parent=0 // pred_check
    _
  $region11: #{translation_operator.1} parent=0 // pred_check_branch
    %22 = sbr.rel (0) target = $region13
  $region12: #{translation_operator.1} parent=0 // pred_region
    _
  $region13: #{translation_operator.1} parent=0 // pred_fallthru
    _
  // Predicated region
  $region14: #{translation_operator.1} parent=0 // pred_check
    _
  $region15: #{translation_operator.1} parent=0 // pred_check_branch
    %24 = sbr.rel (0) target = $region17
  $region16: #{translation_operator.1} parent=0 // pred_region
    _
  $region17: #{translation_operator.1} parent=0 // pred_fallthru
    _

</llo_original>
